<compile_context>
chip_gen: v7x
topology: tpu7x:2x2x1
jax: 0.10.0
libtpu: 0.0.40
codegen_flags: <defaults>
</compile_context>

<pallas_src>
import jax
import jax.numpy as jnp
from jax.experimental import pallas as pl
from jax.experimental.pallas import tpu as pltpu

# Problem sizes (small, consistent with the module).
N_BATCH = 2
N_CHANNELS = 4            # n_channels
GROWTH_RATE = 4           # growth_rate
INTER = 4 * GROWTH_RATE   # interChannels = 16
H = 16
W = 16
HW = H * W                # 256 -> lane axis (2 full 128-lane tiles)
PAD = W + 1               # max |flattened tap shift| (= dy*W + dx)
EPS = 1e-5

assert (W & (W - 1)) == 0, "W must be a power of two for the cheap col mask"


# ---------------------------------------------------------------------------
# Fused kernel: one image per grid step, channel-major (channels x H*W).
#   x_ref : (C, HW)            input pixels, channels on sublanes
#   w1_ref: (INTER, C)         1x1 conv weight with BN1 scale folded in
#   b1_ref: (INTER, 1)         BN1 bias
#   w2_ref: (G, 9*INTER)       3x3 conv weight (tap-major) with BN2 scale folded
#   b2_ref: (G, 1)             BN2 bias
#   o_ref : (C+G, HW)          torch.cat((x, out), 1), lane-dense store
# ---------------------------------------------------------------------------
def bottleneck_kernel(x_ref, w1_ref, b1_ref, w2_ref, b2_ref, o_ref):
    x = x_ref[...]                                            # (C, HW)

    # -- conv1 (1x1) + folded BN1 + ReLU: a single channel matmul on the MXU --
    y = jnp.dot(w1_ref[...], x, preferred_element_type=jnp.float32)
    y = jnp.maximum(y + b1_ref[...], 0.0)                     # (INTER, HW)

    # -- conv2 (3x3, pad=1) + folded BN2 + ReLU as ONE K=144 matmul ----------
    # Build the im2col slab with static lane shifts of a lane-padded copy of y
    # plus border masks.  Everything stays in the lane-packed (channels, H*W)
    # layout: no spatial reshapes, no per-tap relayout copies.
    zpad = jnp.zeros((INTER, PAD), jnp.float32)
    yp = jnp.concatenate([zpad, y, zpad], axis=1)             # (INTER, HW+2*PAD)

    lane = jax.lax.broadcasted_iota(jnp.int32, (INTER, HW), 1)
    col = lane & (W - 1)                                      # j = lane % W

    taps = []
    for dy in (-1, 0, 1):
        for dx in (-1, 0, 1):
            s = dy * W + dx                                   # flattened shift
            # shifted[:, l] = y[:, l + s] (reads into the zero pad at edges)
            shifted = jax.lax.slice(yp, (0, PAD + s), (INTER, PAD + s + HW))
            # valid iff 0 <= i+dy < H and 0 <= j+dx < W
            valid = ((lane + dy * W >= 0) & (lane + dy * W < HW) &
                     (col + dx >= 0) & (col + dx < W))
            taps.append(jnp.where(valid, shifted, 0.0))
    slab = jnp.concatenate(taps, axis=0)                      # (9*INTER, HW)

    z = jnp.dot(w2_ref[...], slab, preferred_element_type=jnp.float32)
    z = jnp.maximum(z + b2_ref[...], 0.0)                     # (G, HW)

    # -- torch.cat((x, out), 1): both stores are lane-dense (256 lanes) ------
    o_ref[pl.ds(0, N_CHANNELS), :] = x
    o_ref[pl.ds(N_CHANNELS, GROWTH_RATE), :] = z


# ---------------------------------------------------------------------------
# Wrapper: NCHW in, NCHW out.  Only free reshapes outside the kernel.
# ---------------------------------------------------------------------------
def bottleneck_forward(x_nchw, params):
    """Matches _Bottleneck.forward (eval mode, use_dropout=False)."""
    n, c, h, w = x_nchw.shape
    assert (c, h, w) == (N_CHANNELS, H, W)
    x_cm = x_nchw.reshape(n, c, h * w)        # NCHW is already channel-major

    out_cm = pl.pallas_call(
        bottleneck_kernel,
        out_shape=jax.ShapeDtypeStruct((n, c + GROWTH_RATE, HW), jnp.float32),
        grid=(n,),
        in_specs=[
            pl.BlockSpec((None, N_CHANNELS, HW), lambda i: (i, 0, 0)),
            pl.BlockSpec((INTER, N_CHANNELS), lambda i: (0, 0)),
            pl.BlockSpec((INTER, 1), lambda i: (0, 0)),
            pl.BlockSpec((GROWTH_RATE, 9 * INTER), lambda i: (0, 0)),
            pl.BlockSpec((GROWTH_RATE, 1), lambda i: (0, 0)),
        ],
        out_specs=pl.BlockSpec((None, N_CHANNELS + GROWTH_RATE, HW),
                               lambda i: (i, 0, 0)),
        compiler_params=pltpu.CompilerParams(
            dimension_semantics=("parallel",)),
    )(x_cm, params["w1s"], params["b1"], params["w2s"], params["b2"])

    return out_cm.reshape(n, c + GROWTH_RATE, h, w)


# ---------------------------------------------------------------------------
# Parameter construction (deterministic).  BN scale is folded into the conv
# weights for the kernel (exact: the convs have no bias); unfolded copies are
# kept for the pure-JAX reference.
# ---------------------------------------------------------------------------
def make_params(key):
    ks = jax.random.split(key, 10)
    # conv1 weight as HWIO (1,1,C,INTER) without the leading 1x1
    w1_io = jax.random.normal(ks[0], (N_CHANNELS, INTER), jnp.float32) * 0.1
    # conv2 weight as HWIO (3,3,INTER,G)
    w2_hwio = jax.random.normal(ks[1], (3, 3, INTER, GROWTH_RATE),
                                jnp.float32) * 0.1
    # BN1 (over interChannels) / BN2 (over growth_rate), inference stats.
    g1 = 1.0 + 0.1 * jax.random.normal(ks[2], (INTER,), jnp.float32)
    b1 = 0.1 * jax.random.normal(ks[3], (INTER,), jnp.float32)
    m1 = 0.1 * jax.random.normal(ks[4], (INTER,), jnp.float32)
    v1 = jnp.abs(jax.random.normal(ks[5], (INTER,), jnp.float32)) + 0.5
    g2 = 1.0 + 0.1 * jax.random.normal(ks[6], (GROWTH_RATE,), jnp.float32)
    b2 = 0.1 * jax.random.normal(ks[7], (GROWTH_RATE,), jnp.float32)
    m2 = 0.1 * jax.random.normal(ks[8], (GROWTH_RATE,), jnp.float32)
    v2 = jnp.abs(jax.random.normal(ks[9], (GROWTH_RATE,), jnp.float32)) + 0.5

    scale1 = g1 / jnp.sqrt(v1 + EPS)
    bias1 = b1 - m1 * scale1
    scale2 = g2 / jnp.sqrt(v2 + EPS)
    bias2 = b2 - m2 * scale2

    # Kernel-side folded weights.
    #   w1s[o, c]                         = scale1[o] * w1[o, c]
    #   w2s[g, (ky*3+kx)*INTER + c]       = scale2[g] * w2[ky, kx, c, g]
    w1s = (w1_io * scale1[None, :]).T                                # (INTER, C)
    w2s = jnp.transpose(w2_hwio * scale2[None, None, None, :],
                        (3, 0, 1, 2)).reshape(GROWTH_RATE, 9 * INTER)

    return {
        # kernel params (folded)
        "w1s": w1s,
        "b1": bias1.reshape(INTER, 1),
        "w2s": w2s,
        "b2": bias2.reshape(GROWTH_RATE, 1),
        # reference params (unfolded)
        "w1_hwio": w1_io.reshape(1, 1, N_CHANNELS, INTER),
        "w2_hwio": w2_hwio,
        "scale1": scale1, "bias1": bias1,
        "scale2": scale2, "bias2": bias2,
    }


def reference_forward(x_nchw, params):
    x = jnp.transpose(x_nchw, (0, 2, 3, 1))
    y = jax.lax.conv_general_dilated(
        x, params["w1_hwio"], (1, 1), "VALID",
        dimension_numbers=("NHWC", "HWIO", "NHWC"),
        precision=jax.lax.Precision.HIGHEST)
    y = jnp.maximum(y * params["scale1"] + params["bias1"], 0.0)
    z = jax.lax.conv_general_dilated(
        y, params["w2_hwio"], (1, 1), "SAME",
        dimension_numbers=("NHWC", "HWIO", "NHWC"),
        precision=jax.lax.Precision.HIGHEST)
    z = jnp.maximum(z * params["scale2"] + params["bias2"], 0.0)
    out = jnp.concatenate([x, z], axis=-1)
    return jnp.transpose(out, (0, 3, 1, 2))


if __name__ == "__main__":
    key = jax.random.PRNGKey(0)
    kx, kp = jax.random.split(key)
    x = jax.random.normal(kx, (N_BATCH, N_CHANNELS, H, W), jnp.float32)
    params = make_params(kp)

    out = jax.block_until_ready(bottleneck_forward(x, params))
    assert out.shape == (N_BATCH, N_CHANNELS + GROWTH_RATE, H, W), out.shape

    ref = jax.block_until_ready(reference_forward(x, params))
    err = float(jnp.max(jnp.abs(out - ref)))
    # Kernel matmuls use default MXU precision vs HIGHEST in the reference;
    # the 1e-2 tolerance explicitly accepts the bf16-decomposition error.
    assert err < 1e-2, f"max abs error {err}"

    print("KERNEL_OK")
</pallas_src>

<mosaic_0001>
module attributes {stable_mosaic.version = 11 : i64} {
  func.func @bottleneck_kernel(%arg0: i32, %arg1: memref<1x4x256xf32, #tpu.memory_space<vmem>>, %arg2: memref<16x4xf32, #tpu.memory_space<vmem>>, %arg3: memref<16x1xf32, #tpu.memory_space<vmem>>, %arg4: memref<4x144xf32, #tpu.memory_space<vmem>>, %arg5: memref<4x1xf32, #tpu.memory_space<vmem>>, %arg6: memref<1x8x256xf32, #tpu.memory_space<vmem>>) attributes {dimension_semantics = [#tpu.dimension_semantics<parallel>], iteration_bounds = array<i64: 2>, scalar_prefetch = 0 : i64, scratch_operands = 0 : i64, tpu.core_type = #tpu.core_type<tc>, window_params = [{transform_indices = @transform_0, window_bounds = array<i64: 1, 4, 256>}, {pipeline_mode = #tpu.pipeline_mode<synchronous>, transform_indices = @transform_1, window_bounds = array<i64: 16, 4>}, {pipeline_mode = #tpu.pipeline_mode<synchronous>, transform_indices = @transform_2, window_bounds = array<i64: 16, 1>}, {pipeline_mode = #tpu.pipeline_mode<synchronous>, transform_indices = @transform_3, window_bounds = array<i64: 4, 144>}, {pipeline_mode = #tpu.pipeline_mode<synchronous>, transform_indices = @transform_4, window_bounds = array<i64: 4, 1>}, {transform_indices = @transform_5, window_bounds = array<i64: 1, 8, 256>}]} {
    %c0 = arith.constant 0 : index
    %c0_0 = arith.constant 0 : index
    %c0_1 = arith.constant 0 : index
    %0 = vector.load %arg1[%c0, %c0_0, %c0_1] : memref<1x4x256xf32, #tpu.memory_space<vmem>>, vector<1x4x256xf32>
    %1 = vector.shape_cast %0 : vector<1x4x256xf32> to vector<4x256xf32>
    %c0_2 = arith.constant 0 : index
    %c0_3 = arith.constant 0 : index
    %2 = vector.load %arg2[%c0_2, %c0_3] : memref<16x4xf32, #tpu.memory_space<vmem>>, vector<16x4xf32>
    %cst = arith.constant dense<0.000000e+00> : vector<16x256xf32>
    %3 = tpu.matmul %2, %1, %cst {dimension_numbers = #tpu.dot_dimension_numbers<[1], [0], [0], [1], [0, 0, 1, 1], [], []>} : vector<16x4xf32>, vector<4x256xf32>, vector<16x256xf32> -> vector<16x256xf32>
    %c0_4 = arith.constant 0 : index
    %c0_5 = arith.constant 0 : index
    %4 = vector.load %arg3[%c0_4, %c0_5] : memref<16x1xf32, #tpu.memory_space<vmem>>, vector<16x1xf32>
    %5 = vector.broadcast %4 : vector<16x1xf32> to vector<16x256xf32>
    %6 = arith.addf %3, %5 : vector<16x256xf32>
    %cst_6 = arith.constant 0.000000e+00 : f32
    %7 = vector.broadcast %cst_6 : f32 to vector<16x256xf32>
    %8 = arith.maximumf %6, %7 : vector<16x256xf32>
    %cst_7 = arith.constant 0.000000e+00 : f32
    %9 = vector.broadcast %cst_7 : f32 to vector<16x17xf32>
    %10 = tpu.concatenate %9, %8, %9 in 1 : vector<16x17xf32>, vector<16x256xf32>, vector<16x17xf32> -> vector<16x290xf32>
    %11 = tpu.iota {dimensions = array<i32: 1>} : vector<16x256xi32>
    %c15_i32 = arith.constant 15 : i32
    %12 = vector.broadcast %c15_i32 : i32 to vector<16x256xi32>
    %13 = arith.andi %11, %12 : vector<16x256xi32>
    %14 = vector.extract_strided_slice %10 {offsets = [0, 0], sizes = [16, 256], strides = [1, 1]} : vector<16x290xf32> to vector<16x256xf32>
    %c-16_i32 = arith.constant -16 : i32
    %15 = vector.broadcast %c-16_i32 : i32 to vector<16x256xi32>
    %16 = arith.addi %11, %15 : vector<16x256xi32>
    %c0_i32 = arith.constant 0 : i32
    %17 = vector.broadcast %c0_i32 : i32 to vector<16x256xi32>
    %18 = arith.cmpi sge, %16, %17 : vector<16x256xi32>
    %c-16_i32_8 = arith.constant -16 : i32
    %19 = vector.broadcast %c-16_i32_8 : i32 to vector<16x256xi32>
    %20 = arith.addi %11, %19 : vector<16x256xi32>
    %c256_i32 = arith.constant 256 : i32
    %21 = vector.broadcast %c256_i32 : i32 to vector<16x256xi32>
    %22 = arith.cmpi slt, %20, %21 : vector<16x256xi32>
    %23 = arith.andi %18, %22 : vector<16x256xi1>
    %c-1_i32 = arith.constant -1 : i32
    %24 = vector.broadcast %c-1_i32 : i32 to vector<16x256xi32>
    %25 = arith.addi %13, %24 : vector<16x256xi32>
    %c0_i32_9 = arith.constant 0 : i32
    %26 = vector.broadcast %c0_i32_9 : i32 to vector<16x256xi32>
    %27 = arith.cmpi sge, %25, %26 : vector<16x256xi32>
    %28 = arith.andi %23, %27 : vector<16x256xi1>
    %c-1_i32_10 = arith.constant -1 : i32
    %29 = vector.broadcast %c-1_i32_10 : i32 to vector<16x256xi32>
    %30 = arith.addi %13, %29 : vector<16x256xi32>
    %c16_i32 = arith.constant 16 : i32
    %31 = vector.broadcast %c16_i32 : i32 to vector<16x256xi32>
    %32 = arith.cmpi slt, %30, %31 : vector<16x256xi32>
    %33 = arith.andi %28, %32 : vector<16x256xi1>
    %cst_11 = arith.constant 0.000000e+00 : f32
    %34 = vector.broadcast %cst_11 : f32 to vector<16x256xf32>
    %35 = arith.select %33, %14, %34 : vector<16x256xi1>, vector<16x256xf32>
    %36 = vector.extract_strided_slice %10 {offsets = [0, 1], sizes = [16, 256], strides = [1, 1]} : vector<16x290xf32> to vector<16x256xf32>
    %c-16_i32_12 = arith.constant -16 : i32
    %37 = vector.broadcast %c-16_i32_12 : i32 to vector<16x256xi32>
    %38 = arith.addi %11, %37 : vector<16x256xi32>
    %c0_i32_13 = arith.constant 0 : i32
    %39 = vector.broadcast %c0_i32_13 : i32 to vector<16x256xi32>
    %40 = arith.cmpi sge, %38, %39 : vector<16x256xi32>
    %c-16_i32_14 = arith.constant -16 : i32
    %41 = vector.broadcast %c-16_i32_14 : i32 to vector<16x256xi32>
    %42 = arith.addi %11, %41 : vector<16x256xi32>
    %c256_i32_15 = arith.constant 256 : i32
    %43 = vector.broadcast %c256_i32_15 : i32 to vector<16x256xi32>
    %44 = arith.cmpi slt, %42, %43 : vector<16x256xi32>
    %45 = arith.andi %40, %44 : vector<16x256xi1>
    %c0_i32_16 = arith.constant 0 : i32
    %46 = vector.broadcast %c0_i32_16 : i32 to vector<16x256xi32>
    %47 = arith.addi %13, %46 : vector<16x256xi32>
    %c0_i32_17 = arith.constant 0 : i32
    %48 = vector.broadcast %c0_i32_17 : i32 to vector<16x256xi32>
    %49 = arith.cmpi sge, %47, %48 : vector<16x256xi32>
    %50 = arith.andi %45, %49 : vector<16x256xi1>
    %c0_i32_18 = arith.constant 0 : i32
    %51 = vector.broadcast %c0_i32_18 : i32 to vector<16x256xi32>
    %52 = arith.addi %13, %51 : vector<16x256xi32>
    %c16_i32_19 = arith.constant 16 : i32
    %53 = vector.broadcast %c16_i32_19 : i32 to vector<16x256xi32>
    %54 = arith.cmpi slt, %52, %53 : vector<16x256xi32>
    %55 = arith.andi %50, %54 : vector<16x256xi1>
    %cst_20 = arith.constant 0.000000e+00 : f32
    %56 = vector.broadcast %cst_20 : f32 to vector<16x256xf32>
    %57 = arith.select %55, %36, %56 : vector<16x256xi1>, vector<16x256xf32>
    %58 = vector.extract_strided_slice %10 {offsets = [0, 2], sizes = [16, 256], strides = [1, 1]} : vector<16x290xf32> to vector<16x256xf32>
    %c-16_i32_21 = arith.constant -16 : i32
    %59 = vector.broadcast %c-16_i32_21 : i32 to vector<16x256xi32>
    %60 = arith.addi %11, %59 : vector<16x256xi32>
    %c0_i32_22 = arith.constant 0 : i32
    %61 = vector.broadcast %c0_i32_22 : i32 to vector<16x256xi32>
    %62 = arith.cmpi sge, %60, %61 : vector<16x256xi32>
    %c-16_i32_23 = arith.constant -16 : i32
    %63 = vector.broadcast %c-16_i32_23 : i32 to vector<16x256xi32>
    %64 = arith.addi %11, %63 : vector<16x256xi32>
    %c256_i32_24 = arith.constant 256 : i32
    %65 = vector.broadcast %c256_i32_24 : i32 to vector<16x256xi32>
    %66 = arith.cmpi slt, %64, %65 : vector<16x256xi32>
    %67 = arith.andi %62, %66 : vector<16x256xi1>
    %c1_i32 = arith.constant 1 : i32
    %68 = vector.broadcast %c1_i32 : i32 to vector<16x256xi32>
    %69 = arith.addi %13, %68 : vector<16x256xi32>
    %c0_i32_25 = arith.constant 0 : i32
    %70 = vector.broadcast %c0_i32_25 : i32 to vector<16x256xi32>
    %71 = arith.cmpi sge, %69, %70 : vector<16x256xi32>
    %72 = arith.andi %67, %71 : vector<16x256xi1>
    %c1_i32_26 = arith.constant 1 : i32
    %73 = vector.broadcast %c1_i32_26 : i32 to vector<16x256xi32>
    %74 = arith.addi %13, %73 : vector<16x256xi32>
    %c16_i32_27 = arith.constant 16 : i32
    %75 = vector.broadcast %c16_i32_27 : i32 to vector<16x256xi32>
    %76 = arith.cmpi slt, %74, %75 : vector<16x256xi32>
    %77 = arith.andi %72, %76 : vector<16x256xi1>
    %cst_28 = arith.constant 0.000000e+00 : f32
    %78 = vector.broadcast %cst_28 : f32 to vector<16x256xf32>
    %79 = arith.select %77, %58, %78 : vector<16x256xi1>, vector<16x256xf32>
    %80 = vector.extract_strided_slice %10 {offsets = [0, 16], sizes = [16, 256], strides = [1, 1]} : vector<16x290xf32> to vector<16x256xf32>
    %c0_i32_29 = arith.constant 0 : i32
    %81 = vector.broadcast %c0_i32_29 : i32 to vector<16x256xi32>
    %82 = arith.addi %11, %81 : vector<16x256xi32>
    %c0_i32_30 = arith.constant 0 : i32
    %83 = vector.broadcast %c0_i32_30 : i32 to vector<16x256xi32>
    %84 = arith.cmpi sge, %82, %83 : vector<16x256xi32>
    %c0_i32_31 = arith.constant 0 : i32
    %85 = vector.broadcast %c0_i32_31 : i32 to vector<16x256xi32>
    %86 = arith.addi %11, %85 : vector<16x256xi32>
    %c256_i32_32 = arith.constant 256 : i32
    %87 = vector.broadcast %c256_i32_32 : i32 to vector<16x256xi32>
    %88 = arith.cmpi slt, %86, %87 : vector<16x256xi32>
    %89 = arith.andi %84, %88 : vector<16x256xi1>
    %c-1_i32_33 = arith.constant -1 : i32
    %90 = vector.broadcast %c-1_i32_33 : i32 to vector<16x256xi32>
    %91 = arith.addi %13, %90 : vector<16x256xi32>
    %c0_i32_34 = arith.constant 0 : i32
    %92 = vector.broadcast %c0_i32_34 : i32 to vector<16x256xi32>
    %93 = arith.cmpi sge, %91, %92 : vector<16x256xi32>
    %94 = arith.andi %89, %93 : vector<16x256xi1>
    %c-1_i32_35 = arith.constant -1 : i32
    %95 = vector.broadcast %c-1_i32_35 : i32 to vector<16x256xi32>
    %96 = arith.addi %13, %95 : vector<16x256xi32>
    %c16_i32_36 = arith.constant 16 : i32
    %97 = vector.broadcast %c16_i32_36 : i32 to vector<16x256xi32>
    %98 = arith.cmpi slt, %96, %97 : vector<16x256xi32>
    %99 = arith.andi %94, %98 : vector<16x256xi1>
    %cst_37 = arith.constant 0.000000e+00 : f32
    %100 = vector.broadcast %cst_37 : f32 to vector<16x256xf32>
    %101 = arith.select %99, %80, %100 : vector<16x256xi1>, vector<16x256xf32>
    %102 = vector.extract_strided_slice %10 {offsets = [0, 17], sizes = [16, 256], strides = [1, 1]} : vector<16x290xf32> to vector<16x256xf32>
    %c0_i32_38 = arith.constant 0 : i32
    %103 = vector.broadcast %c0_i32_38 : i32 to vector<16x256xi32>
    %104 = arith.addi %11, %103 : vector<16x256xi32>
    %c0_i32_39 = arith.constant 0 : i32
    %105 = vector.broadcast %c0_i32_39 : i32 to vector<16x256xi32>
    %106 = arith.cmpi sge, %104, %105 : vector<16x256xi32>
    %c0_i32_40 = arith.constant 0 : i32
    %107 = vector.broadcast %c0_i32_40 : i32 to vector<16x256xi32>
    %108 = arith.addi %11, %107 : vector<16x256xi32>
    %c256_i32_41 = arith.constant 256 : i32
    %109 = vector.broadcast %c256_i32_41 : i32 to vector<16x256xi32>
    %110 = arith.cmpi slt, %108, %109 : vector<16x256xi32>
    %111 = arith.andi %106, %110 : vector<16x256xi1>
    %c0_i32_42 = arith.constant 0 : i32
    %112 = vector.broadcast %c0_i32_42 : i32 to vector<16x256xi32>
    %113 = arith.addi %13, %112 : vector<16x256xi32>
    %c0_i32_43 = arith.constant 0 : i32
    %114 = vector.broadcast %c0_i32_43 : i32 to vector<16x256xi32>
    %115 = arith.cmpi sge, %113, %114 : vector<16x256xi32>
    %116 = arith.andi %111, %115 : vector<16x256xi1>
    %c0_i32_44 = arith.constant 0 : i32
    %117 = vector.broadcast %c0_i32_44 : i32 to vector<16x256xi32>
    %118 = arith.addi %13, %117 : vector<16x256xi32>
    %c16_i32_45 = arith.constant 16 : i32
    %119 = vector.broadcast %c16_i32_45 : i32 to vector<16x256xi32>
    %120 = arith.cmpi slt, %118, %119 : vector<16x256xi32>
    %121 = arith.andi %116, %120 : vector<16x256xi1>
    %cst_46 = arith.constant 0.000000e+00 : f32
    %122 = vector.broadcast %cst_46 : f32 to vector<16x256xf32>
    %123 = arith.select %121, %102, %122 : vector<16x256xi1>, vector<16x256xf32>
    %124 = vector.extract_strided_slice %10 {offsets = [0, 18], sizes = [16, 256], strides = [1, 1]} : vector<16x290xf32> to vector<16x256xf32>
    %c0_i32_47 = arith.constant 0 : i32
    %125 = vector.broadcast %c0_i32_47 : i32 to vector<16x256xi32>
    %126 = arith.addi %11, %125 : vector<16x256xi32>
    %c0_i32_48 = arith.constant 0 : i32
    %127 = vector.broadcast %c0_i32_48 : i32 to vector<16x256xi32>
    %128 = arith.cmpi sge, %126, %127 : vector<16x256xi32>
    %c0_i32_49 = arith.constant 0 : i32
    %129 = vector.broadcast %c0_i32_49 : i32 to vector<16x256xi32>
    %130 = arith.addi %11, %129 : vector<16x256xi32>
    %c256_i32_50 = arith.constant 256 : i32
    %131 = vector.broadcast %c256_i32_50 : i32 to vector<16x256xi32>
    %132 = arith.cmpi slt, %130, %131 : vector<16x256xi32>
    %133 = arith.andi %128, %132 : vector<16x256xi1>
    %c1_i32_51 = arith.constant 1 : i32
    %134 = vector.broadcast %c1_i32_51 : i32 to vector<16x256xi32>
    %135 = arith.addi %13, %134 : vector<16x256xi32>
    %c0_i32_52 = arith.constant 0 : i32
    %136 = vector.broadcast %c0_i32_52 : i32 to vector<16x256xi32>
    %137 = arith.cmpi sge, %135, %136 : vector<16x256xi32>
    %138 = arith.andi %133, %137 : vector<16x256xi1>
    %c1_i32_53 = arith.constant 1 : i32
    %139 = vector.broadcast %c1_i32_53 : i32 to vector<16x256xi32>
    %140 = arith.addi %13, %139 : vector<16x256xi32>
    %c16_i32_54 = arith.constant 16 : i32
    %141 = vector.broadcast %c16_i32_54 : i32 to vector<16x256xi32>
    %142 = arith.cmpi slt, %140, %141 : vector<16x256xi32>
    %143 = arith.andi %138, %142 : vector<16x256xi1>
    %cst_55 = arith.constant 0.000000e+00 : f32
    %144 = vector.broadcast %cst_55 : f32 to vector<16x256xf32>
    %145 = arith.select %143, %124, %144 : vector<16x256xi1>, vector<16x256xf32>
    %146 = vector.extract_strided_slice %10 {offsets = [0, 32], sizes = [16, 256], strides = [1, 1]} : vector<16x290xf32> to vector<16x256xf32>
    %c16_i32_56 = arith.constant 16 : i32
    %147 = vector.broadcast %c16_i32_56 : i32 to vector<16x256xi32>
    %148 = arith.addi %11, %147 : vector<16x256xi32>
    %c0_i32_57 = arith.constant 0 : i32
    %149 = vector.broadcast %c0_i32_57 : i32 to vector<16x256xi32>
    %150 = arith.cmpi sge, %148, %149 : vector<16x256xi32>
    %c16_i32_58 = arith.constant 16 : i32
    %151 = vector.broadcast %c16_i32_58 : i32 to vector<16x256xi32>
    %152 = arith.addi %11, %151 : vector<16x256xi32>
    %c256_i32_59 = arith.constant 256 : i32
    %153 = vector.broadcast %c256_i32_59 : i32 to vector<16x256xi32>
    %154 = arith.cmpi slt, %152, %153 : vector<16x256xi32>
    %155 = arith.andi %150, %154 : vector<16x256xi1>
    %c-1_i32_60 = arith.constant -1 : i32
    %156 = vector.broadcast %c-1_i32_60 : i32 to vector<16x256xi32>
    %157 = arith.addi %13, %156 : vector<16x256xi32>
    %c0_i32_61 = arith.constant 0 : i32
    %158 = vector.broadcast %c0_i32_61 : i32 to vector<16x256xi32>
    %159 = arith.cmpi sge, %157, %158 : vector<16x256xi32>
    %160 = arith.andi %155, %159 : vector<16x256xi1>
    %c-1_i32_62 = arith.constant -1 : i32
    %161 = vector.broadcast %c-1_i32_62 : i32 to vector<16x256xi32>
    %162 = arith.addi %13, %161 : vector<16x256xi32>
    %c16_i32_63 = arith.constant 16 : i32
    %163 = vector.broadcast %c16_i32_63 : i32 to vector<16x256xi32>
    %164 = arith.cmpi slt, %162, %163 : vector<16x256xi32>
    %165 = arith.andi %160, %164 : vector<16x256xi1>
    %cst_64 = arith.constant 0.000000e+00 : f32
    %166 = vector.broadcast %cst_64 : f32 to vector<16x256xf32>
    %167 = arith.select %165, %146, %166 : vector<16x256xi1>, vector<16x256xf32>
    %168 = vector.extract_strided_slice %10 {offsets = [0, 33], sizes = [16, 256], strides = [1, 1]} : vector<16x290xf32> to vector<16x256xf32>
    %c16_i32_65 = arith.constant 16 : i32
    %169 = vector.broadcast %c16_i32_65 : i32 to vector<16x256xi32>
    %170 = arith.addi %11, %169 : vector<16x256xi32>
    %c0_i32_66 = arith.constant 0 : i32
    %171 = vector.broadcast %c0_i32_66 : i32 to vector<16x256xi32>
    %172 = arith.cmpi sge, %170, %171 : vector<16x256xi32>
    %c16_i32_67 = arith.constant 16 : i32
    %173 = vector.broadcast %c16_i32_67 : i32 to vector<16x256xi32>
    %174 = arith.addi %11, %173 : vector<16x256xi32>
    %c256_i32_68 = arith.constant 256 : i32
    %175 = vector.broadcast %c256_i32_68 : i32 to vector<16x256xi32>
    %176 = arith.cmpi slt, %174, %175 : vector<16x256xi32>
    %177 = arith.andi %172, %176 : vector<16x256xi1>
    %c0_i32_69 = arith.constant 0 : i32
    %178 = vector.broadcast %c0_i32_69 : i32 to vector<16x256xi32>
    %179 = arith.addi %13, %178 : vector<16x256xi32>
    %c0_i32_70 = arith.constant 0 : i32
    %180 = vector.broadcast %c0_i32_70 : i32 to vector<16x256xi32>
    %181 = arith.cmpi sge, %179, %180 : vector<16x256xi32>
    %182 = arith.andi %177, %181 : vector<16x256xi1>
    %c0_i32_71 = arith.constant 0 : i32
    %183 = vector.broadcast %c0_i32_71 : i32 to vector<16x256xi32>
    %184 = arith.addi %13, %183 : vector<16x256xi32>
    %c16_i32_72 = arith.constant 16 : i32
    %185 = vector.broadcast %c16_i32_72 : i32 to vector<16x256xi32>
    %186 = arith.cmpi slt, %184, %185 : vector<16x256xi32>
    %187 = arith.andi %182, %186 : vector<16x256xi1>
    %cst_73 = arith.constant 0.000000e+00 : f32
    %188 = vector.broadcast %cst_73 : f32 to vector<16x256xf32>
    %189 = arith.select %187, %168, %188 : vector<16x256xi1>, vector<16x256xf32>
    %190 = vector.extract_strided_slice %10 {offsets = [0, 34], sizes = [16, 256], strides = [1, 1]} : vector<16x290xf32> to vector<16x256xf32>
    %c16_i32_74 = arith.constant 16 : i32
    %191 = vector.broadcast %c16_i32_74 : i32 to vector<16x256xi32>
    %192 = arith.addi %11, %191 : vector<16x256xi32>
    %c0_i32_75 = arith.constant 0 : i32
    %193 = vector.broadcast %c0_i32_75 : i32 to vector<16x256xi32>
    %194 = arith.cmpi sge, %192, %193 : vector<16x256xi32>
    %c16_i32_76 = arith.constant 16 : i32
    %195 = vector.broadcast %c16_i32_76 : i32 to vector<16x256xi32>
    %196 = arith.addi %11, %195 : vector<16x256xi32>
    %c256_i32_77 = arith.constant 256 : i32
    %197 = vector.broadcast %c256_i32_77 : i32 to vector<16x256xi32>
    %198 = arith.cmpi slt, %196, %197 : vector<16x256xi32>
    %199 = arith.andi %194, %198 : vector<16x256xi1>
    %c1_i32_78 = arith.constant 1 : i32
    %200 = vector.broadcast %c1_i32_78 : i32 to vector<16x256xi32>
    %201 = arith.addi %13, %200 : vector<16x256xi32>
    %c0_i32_79 = arith.constant 0 : i32
    %202 = vector.broadcast %c0_i32_79 : i32 to vector<16x256xi32>
    %203 = arith.cmpi sge, %201, %202 : vector<16x256xi32>
    %204 = arith.andi %199, %203 : vector<16x256xi1>
    %c1_i32_80 = arith.constant 1 : i32
    %205 = vector.broadcast %c1_i32_80 : i32 to vector<16x256xi32>
    %206 = arith.addi %13, %205 : vector<16x256xi32>
    %c16_i32_81 = arith.constant 16 : i32
    %207 = vector.broadcast %c16_i32_81 : i32 to vector<16x256xi32>
    %208 = arith.cmpi slt, %206, %207 : vector<16x256xi32>
    %209 = arith.andi %204, %208 : vector<16x256xi1>
    %cst_82 = arith.constant 0.000000e+00 : f32
    %210 = vector.broadcast %cst_82 : f32 to vector<16x256xf32>
    %211 = arith.select %209, %190, %210 : vector<16x256xi1>, vector<16x256xf32>
    %212 = tpu.concatenate %35, %57, %79, %101, %123, %145, %167, %189, %211 in 0 : vector<16x256xf32>, vector<16x256xf32>, vector<16x256xf32>, vector<16x256xf32>, vector<16x256xf32>, vector<16x256xf32>, vector<16x256xf32>, vector<16x256xf32>, vector<16x256xf32> -> vector<144x256xf32>
    %c0_83 = arith.constant 0 : index
    %c0_84 = arith.constant 0 : index
    %213 = vector.load %arg4[%c0_83, %c0_84] : memref<4x144xf32, #tpu.memory_space<vmem>>, vector<4x144xf32>
    %cst_85 = arith.constant dense<0.000000e+00> : vector<4x256xf32>
    %214 = tpu.matmul %213, %212, %cst_85 {dimension_numbers = #tpu.dot_dimension_numbers<[1], [0], [0], [1], [0, 0, 1, 1], [], []>} : vector<4x144xf32>, vector<144x256xf32>, vector<4x256xf32> -> vector<4x256xf32>
    %c0_86 = arith.constant 0 : index
    %c0_87 = arith.constant 0 : index
    %215 = vector.load %arg5[%c0_86, %c0_87] : memref<4x1xf32, #tpu.memory_space<vmem>>, vector<4x1xf32>
    %216 = vector.broadcast %215 : vector<4x1xf32> to vector<4x256xf32>
    %217 = arith.addf %214, %216 : vector<4x256xf32>
    %cst_88 = arith.constant 0.000000e+00 : f32
    %218 = vector.broadcast %cst_88 : f32 to vector<4x256xf32>
    %219 = arith.maximumf %217, %218 : vector<4x256xf32>
    %c0_89 = arith.constant 0 : index
    %c0_90 = arith.constant 0 : index
    %c0_91 = arith.constant 0 : index
    %220 = vector.load %arg6[%c0_89, %c0_90, %c0_91] : memref<1x8x256xf32, #tpu.memory_space<vmem>>, vector<1x4x256xf32>
    %221 = vector.shape_cast %220 : vector<1x4x256xf32> to vector<4x256xf32>
    %222 = vector.shape_cast %1 : vector<4x256xf32> to vector<1x4x256xf32>
    tpu.vector_store %arg6[%c0_89, %c0_90, %c0_91], %222 {strides = array<i32>} : memref<1x8x256xf32, #tpu.memory_space<vmem>>, vector<1x4x256xf32>,
    %c0_92 = arith.constant 0 : index
    %c4 = arith.constant 4 : index
    %c0_93 = arith.constant 0 : index
    %223 = vector.load %arg6[%c0_92, %c4, %c0_93] : memref<1x8x256xf32, #tpu.memory_space<vmem>>, vector<1x4x256xf32>
    %224 = vector.shape_cast %223 : vector<1x4x256xf32> to vector<4x256xf32>
    %225 = vector.shape_cast %219 : vector<4x256xf32> to vector<1x4x256xf32>
    tpu.vector_store %arg6[%c0_92, %c4, %c0_93], %225 {strides = array<i32>} : memref<1x8x256xf32, #tpu.memory_space<vmem>>, vector<1x4x256xf32>,
    return
  }
  func.func @transform_0(%arg0: i32) -> (i32, i32, i32) {
    %c0_i32 = arith.constant 0 : i32
    %c0_i32_0 = arith.constant 0 : i32
    %c0_i32_1 = arith.constant 0 : i32
    return %arg0, %c0_i32, %c0_i32_0 : i32, i32, i32
  }
  func.func @transform_1(%arg0: i32) -> (i32, i32) {
    %c0_i32 = arith.constant 0 : i32
    %c0_i32_0 = arith.constant 0 : i32
    %c0_i32_1 = arith.constant 0 : i32
    return %c0_i32, %c0_i32_0 : i32, i32
  }
  func.func @transform_2(%arg0: i32) -> (i32, i32) {
    %c0_i32 = arith.constant 0 : i32
    %c0_i32_0 = arith.constant 0 : i32
    %c0_i32_1 = arith.constant 0 : i32
    return %c0_i32, %c0_i32_0 : i32, i32
  }
  func.func @transform_3(%arg0: i32) -> (i32, i32) {
    %c0_i32 = arith.constant 0 : i32
    %c0_i32_0 = arith.constant 0 : i32
    %c0_i32_1 = arith.constant 0 : i32
    return %c0_i32, %c0_i32_0 : i32, i32
  }
  func.func @transform_4(%arg0: i32) -> (i32, i32) {
    %c0_i32 = arith.constant 0 : i32
    %c0_i32_0 = arith.constant 0 : i32
    %c0_i32_1 = arith.constant 0 : i32
    return %c0_i32, %c0_i32_0 : i32, i32
  }
  func.func @transform_5(%arg0: i32) -> (i32, i32, i32) {
    %c0_i32 = arith.constant 0 : i32
    %c0_i32_0 = arith.constant 0 : i32
    %c0_i32_1 = arith.constant 0 : i32
    return %arg0, %c0_i32, %c0_i32_0 : i32, i32, i32
  }
}

</mosaic_0001>

<llo_original>
// kernel: tpu_custom_call.1
$region0: #{tpu_custom_call.1}
  #allocation0 [shape = 'u32[]', space=smem, size = 0x4, offset = 0x4, fixed_abs, tag = 'smem constant byte address 0x4 - core index']
  #allocation1 [shape = 'u32[144,128]{1,0:T(1,128)}', space=vmem, size = 0x12000, scoped, tag = 'internal scratch']
  %s0 = inlined_call_operand.vmem [shape: f32[2,4,256], index: 0, kind: input, shape index: {}]
  %s1 = inlined_call_operand.vmem [shape: f32[16,4], index: 1, kind: input, shape index: {}]
  %s2 = inlined_call_operand.vmem [shape: f32[16,1], index: 2, kind: input, shape index: {}]
  %s3 = inlined_call_operand.vmem [shape: f32[4,144], index: 3, kind: input, shape index: {}]
  %s4 = inlined_call_operand.vmem [shape: f32[4,1], index: 4, kind: input, shape index: {}]
  %s5 = inlined_call_operand.hbm [shape: f32[2,8,256], index: 5, kind: output, shape index: {}]
  %s6 = sld [smem:[#allocation0]]
  $region53: #{tpu_custom_call.1} parent=0
    _
  %s8 = ssub.s32 1, %s6
  %s9 = scalar_select 0, %s8, %s6
  $region1: #{tpu_custom_call.1} parent=0
    #allocation2 [shape = 'u8[16384]{0}', space=vmem, size = 0x4000, scoped, tag = 'output window, operand 0']
    #allocation3 [shape = 's32[2]{0}', space=sflag, size = 0x8, scoped, tag = 'scoped memory for tpu_custom_call.1']
    %10 = vsyncpa [#allocation3], 0
    %s11 = scalar_lea.sflag [#allocation3], 1
    %12 = vsyncpa %s11, 0
    loop: start=0, step=1, limit=4
    $region2: #{tpu_custom_call.1} parent=1 // loop_pre_header
      _
    $region3: #{tpu_custom_call.1} parent=1 // loop_header
      %s14 = sphi 0, %s18
      %p15 = scmp.ge.s32.totalorder %s14, 4
      %s24 = sphi 0, %s26
      %s27 = sphi 0, %s24
      %s28 = sphi 0, %s27
      %s44 = sphi 0, %s28
      %s48 = sphi 0, %s48
      %s50 = sphi 0, %s48
      %s51 = sphi 0, %s50
      %s65 = sphi 0, %s51
      %s69 = sphi 0, %s69
      %s71 = sphi 0, %s69
      %s72 = sphi 0, %s71
      %s86 = sphi 0, %s72
      %s90 = sphi 0, %s90
      %s92 = sphi 0, %s90
      %s93 = sphi 0, %s92
      %s107 = sphi 0, %s93
      %s111 = sphi 0, %s111
      %s113 = sphi 0, %s111
      %s114 = sphi 0, %s113
      %s128 = sphi 0, %s114
      %s134 = sphi 0, %s136
      %s137 = sphi 0, %s134
      %s138 = sphi 0, %s137
      %s154 = sphi 0, %s138
    $region4: #{tpu_custom_call.1} parent=1 // loop_header_branch
      %17 = sbr.rel (%p15) target = $region8
    $region5: #{tpu_custom_call.1} parent=1 // loop_body
      %s19 = ssub.s32 %s14, 1
      %s20 = ssub.s32 %s14, 2
      %s21 = sadd.s32 %s14, 1
      %s22 = ssub.s32 %s14, %s21
      %p23 = scmp.eq.s32.totalorder %s22, 0
      %s25 = sadd.s32 %s24, 1
      %s26 = scalar_select %p23, %s24, %s25
      %p29 = pneg %p23
      %p30 = scmp.eq.s32.totalorder %s14, 1
      %p31 = por %p29, %p30
      %p32 = scmp.ne.s32.totalorder %s24, %s27
      %p33 = scmp.eq.s32.totalorder %s14, 0
      %p34 = por %p32, %p33
      %p35 = scmp.ne.s32.totalorder %s24, %s27
      %p36 = scmp.eq.s32.totalorder %s19, 1
      %p37 = por %p35, %p36
      %p38 = scmp.ne.s32.totalorder %s27, %s28
      %p39 = scmp.eq.s32.totalorder %s19, 0
      %p40 = por %p38, %p39
      %p41 = scmp.ne.s32.totalorder %s27, %s28
      %p42 = scmp.eq.s32.totalorder %s20, 1
      %p43 = por %p41, %p42
      %p45 = scmp.ne.s32.totalorder %s28, %s44
      %p46 = scmp.eq.s32.totalorder %s20, 0
      %p47 = por %p45, %p46
      %s49 = sadd.s32 %s48, 1
      %p52 = scmp.eq.s32.totalorder %s14, 1
      %p53 = scmp.ne.s32.totalorder %s48, %s50
      %p54 = scmp.eq.s32.totalorder %s14, 0
      %p55 = por %p53, %p54
      %p56 = scmp.ne.s32.totalorder %s48, %s50
      %p57 = scmp.eq.s32.totalorder %s19, 1
      %p58 = por %p56, %p57
      %p59 = scmp.ne.s32.totalorder %s50, %s51
      %p60 = scmp.eq.s32.totalorder %s19, 0
      %p61 = por %p59, %p60
      %p62 = scmp.ne.s32.totalorder %s50, %s51
      %p63 = scmp.eq.s32.totalorder %s20, 1
      %p64 = por %p62, %p63
      %p66 = scmp.ne.s32.totalorder %s51, %s65
      %p67 = scmp.eq.s32.totalorder %s20, 0
      %p68 = por %p66, %p67
      %s70 = sadd.s32 %s69, 1
      %p73 = scmp.eq.s32.totalorder %s14, 1
      %p74 = scmp.ne.s32.totalorder %s69, %s71
      %p75 = scmp.eq.s32.totalorder %s14, 0
      %p76 = por %p74, %p75
      %p77 = scmp.ne.s32.totalorder %s69, %s71
      %p78 = scmp.eq.s32.totalorder %s19, 1
      %p79 = por %p77, %p78
      %p80 = scmp.ne.s32.totalorder %s71, %s72
      %p81 = scmp.eq.s32.totalorder %s19, 0
      %p82 = por %p80, %p81
      %p83 = scmp.ne.s32.totalorder %s71, %s72
      %p84 = scmp.eq.s32.totalorder %s20, 1
      %p85 = por %p83, %p84
      %p87 = scmp.ne.s32.totalorder %s72, %s86
      %p88 = scmp.eq.s32.totalorder %s20, 0
      %p89 = por %p87, %p88
      %s91 = sadd.s32 %s90, 1
      %p94 = scmp.eq.s32.totalorder %s14, 1
      %p95 = scmp.ne.s32.totalorder %s90, %s92
      %p96 = scmp.eq.s32.totalorder %s14, 0
      %p97 = por %p95, %p96
      %p98 = scmp.ne.s32.totalorder %s90, %s92
      %p99 = scmp.eq.s32.totalorder %s19, 1
      %p100 = por %p98, %p99
      %p101 = scmp.ne.s32.totalorder %s92, %s93
      %p102 = scmp.eq.s32.totalorder %s19, 0
      %p103 = por %p101, %p102
      %p104 = scmp.ne.s32.totalorder %s92, %s93
      %p105 = scmp.eq.s32.totalorder %s20, 1
      %p106 = por %p104, %p105
      %p108 = scmp.ne.s32.totalorder %s93, %s107
      %p109 = scmp.eq.s32.totalorder %s20, 0
      %p110 = por %p108, %p109
      %s112 = sadd.s32 %s111, 1
      %p115 = scmp.eq.s32.totalorder %s14, 1
      %p116 = scmp.ne.s32.totalorder %s111, %s113
      %p117 = scmp.eq.s32.totalorder %s14, 0
      %p118 = por %p116, %p117
      %p119 = scmp.ne.s32.totalorder %s111, %s113
      %p120 = scmp.eq.s32.totalorder %s19, 1
      %p121 = por %p119, %p120
      %p122 = scmp.ne.s32.totalorder %s113, %s114
      %p123 = scmp.eq.s32.totalorder %s19, 0
      %p124 = por %p122, %p123
      %p125 = scmp.ne.s32.totalorder %s113, %s114
      %p126 = scmp.eq.s32.totalorder %s20, 1
      %p127 = por %p125, %p126
      %p129 = scmp.ne.s32.totalorder %s114, %s128
      %p130 = scmp.eq.s32.totalorder %s20, 0
      %p131 = por %p129, %p130
      %s132 = ssub.s32 %s14, %s21
      %p133 = scmp.eq.s32.totalorder %s132, 0
      %s135 = sadd.s32 %s134, 1
      %s136 = scalar_select %p133, %s134, %s135
      %p139 = pneg %p133
      %p140 = scmp.eq.s32.totalorder %s14, 1
      %p141 = por %p139, %p140
      %p142 = scmp.ne.s32.totalorder %s134, %s137
      %p143 = scmp.eq.s32.totalorder %s14, 0
      %p144 = por %p142, %p143
      %p145 = scmp.ne.s32.totalorder %s134, %s137
      %p146 = scmp.eq.s32.totalorder %s19, 1
      %p147 = por %p145, %p146
      %p148 = scmp.ne.s32.totalorder %s137, %s138
      %p149 = scmp.eq.s32.totalorder %s19, 0
      %p150 = por %p148, %p149
      %p151 = scmp.ne.s32.totalorder %s137, %s138
      %p152 = scmp.eq.s32.totalorder %s20, 1
      %p153 = por %p151, %p152
      %p155 = scmp.ne.s32.totalorder %s138, %s154
      %p156 = scmp.eq.s32.totalorder %s20, 0
      %p157 = por %p155, %p156
      %p158 = scmp.le.s32.totalorder 1, %s14
      %p159 = scmp.lt.s32.totalorder %s14, 3
      %p160 = pnand %p158, %p159
      %p161 = pneg %p160
      // Predicated region
      $region9: #{tpu_custom_call.1} parent=5 // pred_check
        _
      $region10: #{tpu_custom_call.1} parent=5 // pred_check_branch
        %163 = sbr.rel (%p160) target = $region12
      $region11: #{tpu_custom_call.1} parent=5 // pred_region
        %s164 = ssub.s32 %s14, 1
        // Predicated region
        $region13: #{tpu_custom_call.1} parent=11 // pred_check
          %p165 = pneg %p61
        $region14: #{tpu_custom_call.1} parent=11 // pred_check_branch
          %167 = sbr.rel (%p165) target = $region16
        $region15: #{tpu_custom_call.1} parent=11 // pred_region
          _
        $region16: #{tpu_custom_call.1} parent=11 // pred_fallthru
          _
        // Predicated region
        $region17: #{tpu_custom_call.1} parent=11 // pred_check
          %p168 = pneg %p82
        $region18: #{tpu_custom_call.1} parent=11 // pred_check_branch
          %170 = sbr.rel (%p168) target = $region20
        $region19: #{tpu_custom_call.1} parent=11 // pred_region
          _
        $region20: #{tpu_custom_call.1} parent=11 // pred_fallthru
          _
        // Predicated region
        $region21: #{tpu_custom_call.1} parent=11 // pred_check
          %p171 = pneg %p103
        $region22: #{tpu_custom_call.1} parent=11 // pred_check_branch
          %173 = sbr.rel (%p171) target = $region24
        $region23: #{tpu_custom_call.1} parent=11 // pred_region
          _
        $region24: #{tpu_custom_call.1} parent=11 // pred_fallthru
          _
        // Predicated region
        $region25: #{tpu_custom_call.1} parent=11 // pred_check
          %p174 = pneg %p124
        $region26: #{tpu_custom_call.1} parent=11 // pred_check_branch
          %176 = sbr.rel (%p174) target = $region28
        $region27: #{tpu_custom_call.1} parent=11 // pred_region
          _
        $region28: #{tpu_custom_call.1} parent=11 // pred_fallthru
          _
      $region12: #{tpu_custom_call.1} parent=5 // pred_fallthru
        _
      %p177 = scmp.lt.s32.totalorder %s14, 2
      // Predicated region
      $region29: #{tpu_custom_call.1} parent=5 // pred_check
        %p178 = pneg %p177
      $region30: #{tpu_custom_call.1} parent=5 // pred_check_branch
        %180 = sbr.rel (%p178) target = $region32
      $region31: #{tpu_custom_call.1} parent=5 // pred_region
        // Predicated region
        $region33: #{tpu_custom_call.1} parent=31 // pred_check
          %p181 = pneg %p34
        $region34: #{tpu_custom_call.1} parent=31 // pred_check_branch
          %183 = sbr.rel (%p181) target = $region36
        $region35: #{tpu_custom_call.1} parent=31 // pred_region
          %p184 = scmp.lt.s32.totalorder %s14, 1
          %s185 = scalar_select %p184, %s14, 1
          %s186 = smul.addr %s185, 2
          %s187 = smul.addr %s186, 4
          %s188 = scalar_lea.vmem %s0, %s187
        $region36: #{tpu_custom_call.1} parent=31 // pred_fallthru
          _
      $region32: #{tpu_custom_call.1} parent=5 // pred_fallthru
        _
      %p189 = scmp.le.s32.totalorder 1, %s14
      %p190 = scmp.lt.s32.totalorder %s14, 3
      %p191 = pnand %p189, %p190
      %p192 = pneg %p191
      // Predicated region
      $region37: #{tpu_custom_call.1} parent=5 // pred_check
        _
      $region38: #{tpu_custom_call.1} parent=5 // pred_check_branch
        %194 = sbr.rel (%p191) target = $region40
      $region39: #{tpu_custom_call.1} parent=5 // pred_region
        %s195 = ssub.s32 %s14, 1
        %p196 = scmp.lt.s32.totalorder %s19, 1
        %s197 = scalar_select %p196, %s19, 1
        %s198 = smul.addr %s197, 2
        %s199 = smul.addr %s198, 4
        %s200 = scalar_lea.vmem %s0, %s199
        %p201 = pneg %p40
        %p202 = pneg %p37
        %p203 = pneg %p61
        %p204 = pneg %p58
        %p205 = pneg %p82
        %p206 = pneg %p79
        %p207 = pneg %p103
        %p208 = pneg %p100
        %p209 = pneg %p124
        %p210 = pneg %p121
        %p211 = pneg %p150
        %p212 = pneg %p147
        %s213 = sand.u32 %s137, 1
        %s214 = scalar_lea.sflag [#allocation3], %s213
        %s215 = sand.u32 %s137, 1
        %s216 = smul.addr %s215, 16
        %s217 = scalar_lea.vmem [#allocation2], %s216
        %p218 = scmp.lt.s32.totalorder %s19, 1
        %s219 = scalar_select %p218, %s19, 1
        %s220 = smul.addr %s219, 2
        %s221 = smul.addr %s220, 4
        %s222 = scalar_lea.vmem %s0, %s221
        %v223 = vld [vmem:[%s222] sm:$0xff]
        %v224 = vld [vmem:[%s1] sm:$0xff]
        %v225 = vld [vmem:[%s1 + $0x8] sm:$0xff]
        %v226 = vld [vmem:[%s2] sm:$0xff]
        %v227 = vld [vmem:[%s2 + $0x8] sm:$0xff]
        %229 = vset.pattern.permute.xlu0 0
        %230 = vperm.xlu0 %229, %v226
        %v231 = vpop.permute.xlu0 %230
        %234 = vset.pattern.permute.xlu0 0
        %235 = vperm.xlu0 %234, %v227
        %v236 = vpop.permute.xlu0 %235
        %v239 = vcombine.high %v223, %v223
        %vm240 = vcmask 31744
        %v242 = vsel %vm240, %v224, 0
        %v245 = vsel %vm240, %v225, 0
        %vm247 = vcmask 1043456
        %v248 = vsel %vm247, %v223, 0
        %v250 = vsel %vm247, %v239, 0
        %252 = vmatprep.subr.mxu0 %v250
        %253 = vmatpush1.msra.mxu0 %v248
        %254 = vmatprep.subr.mxu0 0.0
        %255 = vmatpush1.msra.mxu0 0.0
        %256 = vmatprep.subr.mxu0 0.0
        %257 = vmatpush1.msra.mxu0 0.0
        %258 = vmatprep.subr.mxu0 0.0
        %259 = vmatpush1.msra.mxu0 0.0
        %260 = vmatprep.subr.mxu0 0.0
        %261 = vmatpush1.msra.mxu0 0.0
        %262 = vmatprep.subr.mxu0 0.0
        %263 = vmatpush1.msra.mxu0 0.0
        %264 = vmatprep.subr.mxu0 0.0
        %265 = vmatpush1.msra.mxu0 0.0
        %266 = vmatprep.subr.mxu0 0.0
        %267 = vmatpush1.msra.mxu0 0.0
        %268 = vmatprep.subr.mxu0 0.0
        %269 = vmatpush1.msra.mxu0 0.0
        %270 = vmatprep.subr.mxu0 0.0
        %271 = vmatpush1.msra.mxu0 0.0
        %272 = vmatprep.subr.mxu0 0.0
        %273 = vmatpush1.msra.mxu0 0.0
        %274 = vmatprep.subr.mxu0 0.0
        %275 = vmatpush1.msra.mxu0 0.0
        %276 = vmatprep.subr.mxu0 0.0
        %277 = vmatpush1.msra.mxu0 0.0
        %278 = vmatprep.subr.mxu0 0.0
        %279 = vmatpush1.msra.mxu0 0.0
        %280 = vmatprep.subr.mxu0 0.0
        %281 = vmatpush1.msra.mxu0 0.0
        %282 = vmatprep.subr.mxu0 0.0
        %283 = vmatpush1.msra.mxu0 0.0
        %284 = vmatprep.subr.mxu0 0.0
        %285 = vmatpush1.msra.mxu0 0.0
        %286 = vmatprep.subr.mxu0 0.0
        %287 = vmatpush1.msra.mxu0 0.0
        %288 = vmatprep.subr.mxu0 0.0
        %289 = vmatpush1.msra.mxu0 0.0
        %290 = vmatprep.subr.mxu0 0.0
        %291 = vmatpush1.msra.mxu0 0.0
        %292 = vmatprep.subr.mxu0 0.0
        %293 = vmatpush1.msra.mxu0 0.0
        %294 = vmatprep.subr.mxu0 0.0
        %295 = vmatpush1.msra.mxu0 0.0
        %296 = vmatprep.subr.mxu0 0.0
        %297 = vmatpush1.msra.mxu0 0.0
        %298 = vmatprep.subr.mxu0 0.0
        %299 = vmatpush1.msra.mxu0 0.0
        %300 = vmatprep.subr.mxu0 0.0
        %301 = vmatpush1.msra.mxu0 0.0
        %302 = vmatprep.subr.mxu0 0.0
        %303 = vmatpush1.msra.mxu0 0.0
        %304 = vmatprep.subr.mxu0 0.0
        %305 = vmatpush1.msra.mxu0 0.0
        %306 = vmatprep.subr.mxu0 0.0
        %307 = vmatpush1.msra.mxu0 0.0
        %308 = vmatprep.subr.mxu0 0.0
        %309 = vmatpush1.msra.mxu0 0.0
        %310 = vmatprep.subr.mxu0 0.0
        %311 = vmatpush1.msra.mxu0 0.0
        %312 = vmatprep.subr.mxu0 0.0
        %313 = vmatpush1.msra.mxu0 0.0
        %314 = vmatprep.subr.mxu0 0.0
        %315 = vmatpush1.msra.mxu0 0.0
        %316 = vmatprep.mubr.f32.mxu0 0.0
        %317 = vmatmul.mubr.f32.gmra.mrb[0].mxu0 %v242
        %v318 = vpop.f32.mrb[0].mxu0
        %v319 = vadd.f32 %v231, %v318
        %v320 = vpop.f32.mrb[0].mxu0
        %v321 = vadd.f32 %v231, %v320
        %322 = vmatprep.mubr.f32.mxu0 0.0
        %323 = vmatmul.mubr.f32.gmra.mrb[0].mxu0 %v245
        %v324 = vpop.f32.mrb[0].mxu0
        %v325 = vadd.f32 %v236, %v324
        %v326 = vpop.f32.mrb[0].mxu0
        %v327 = vadd.f32 %v236, %v326
        %328 = vdwg.mxu0
        %v329 = vmax.f32 %v319, 0.0
        %v330 = vmax.f32 %v321, 0.0
        %v331 = vmax.f32 %v325, 0.0
        %v332 = vmax.f32 %v327, 0.0
        %337 = vrot.lane.b32.xlu0 %v329, 17
        %v338 = vpop.permute.xlu0 %337
        %339 = vrot.lane.b32.xlu0 %v330, 17
        %v340 = vpop.permute.xlu0 %339
        %341 = vrot.lane.b32.xlu0 %v331, 17
        %v342 = vpop.permute.xlu0 %341
        %343 = vrot.lane.b32.xlu0 %v332, 17
        %v344 = vpop.permute.xlu0 %343
        %vm345 = vcmask 138240
        %v346 = vsel %vm345, %v338, %v340
        %v347 = vsel %vm345, %v342, %v344
        %v354 = vsel %vm345, 0.0, %v338
        %v355 = vsel %vm345, 0.0, %v342
        %v356 = vsel %vm345, %v340, 0.0
        %v357 = vsel %vm345, %v344, 0.0
        %v358 = vlaneseq
        %v359 = vand.u32 %v358, 127
        %v360 = vadd.s32 %v359, 128
        %v361 = vand.u32 %v359, 15
        %v362 = vand.u32 %v360, 15
        %v363 = vadd.s32 %v359, 4294967280
        %v364 = vadd.s32 %v360, 4294967280
        %vm365 = vcmp.ge.s32.totalorder %v363, 0
        %vm366 = vcmp.ge.s32.totalorder %v364, 0
        %vm367 = vcmp.lt.s32.totalorder %v363, 256
        %vm368 = vcmp.lt.s32.totalorder %v364, 256
        %vm369 = vmand %vm365, %vm367
        %vm370 = vmand %vm366, %vm368
        %v371 = vadd.s32 %v361, 4294967295
        %v372 = vadd.s32 %v362, 4294967295
        %vm373 = vcmp.ge.s32.totalorder %v371, 0
        %vm374 = vcmp.ge.s32.totalorder %v372, 0
        %vm375 = vmand %vm369, %vm373
        %vm376 = vmand %vm370, %vm374
        %vm377 = vcmp.lt.s32.totalorder %v371, 16
        %vm378 = vcmp.lt.s32.totalorder %v372, 16
        %vm379 = vmand %vm375, %vm377
        %vm380 = vmand %vm376, %vm378
        %v381 = vsel %vm379, %v354, 0.0
        %v382 = vsel %vm380, %v346, 0.0
        %v383 = vsel %vm379, %v355, 0.0
        %v384 = vsel %vm380, %v347, 0.0
        %vm385 = vcmp.ge.s32.totalorder %v361, 0
        %vm386 = vcmp.ge.s32.totalorder %v362, 0
        %vm387 = vmand %vm369, %vm385
        %vm388 = vmand %vm370, %vm386
        %vm389 = vcmp.lt.s32.totalorder %v361, 16
        %vm390 = vcmp.lt.s32.totalorder %v362, 16
        %vm391 = vmand %vm387, %vm389
        %vm392 = vmand %vm388, %vm390
        %397 = vrot.lane.b32.xlu0 %v354, 127
        %v398 = vpop.permute.xlu0 %397
        %399 = vrot.lane.b32.xlu0 %v346, 127
        %v400 = vpop.permute.xlu0 %399
        %401 = vrot.lane.b32.xlu0 %v356, 127
        %v402 = vpop.permute.xlu0 %401
        %403 = vrot.lane.b32.xlu0 %v355, 127
        %v404 = vpop.permute.xlu0 %403
        %405 = vrot.lane.b32.xlu0 %v347, 127
        %v406 = vpop.permute.xlu0 %405
        %407 = vrot.lane.b32.xlu0 %v357, 127
        %v408 = vpop.permute.xlu0 %407
        %vm409 = vcmask 1039360
        %v410 = vsel %vm409, %v398, %v400
        %v411 = vsel %vm409, %v400, %v402
        %v412 = vsel %vm409, %v404, %v406
        %v413 = vsel %vm409, %v406, %v408
        %v418 = vsel %vm391, %v410, 0.0
        %v419 = vsel %vm392, %v411, 0.0
        %v420 = vsel %vm391, %v412, 0.0
        %v421 = vsel %vm392, %v413, 0.0
        %v422 = vadd.s32 %v361, 1
        %v423 = vadd.s32 %v362, 1
        %vm424 = vcmp.ge.s32.totalorder %v422, 0
        %vm425 = vcmp.ge.s32.totalorder %v423, 0
        %vm426 = vmand %vm369, %vm424
        %vm427 = vmand %vm370, %vm425
        %vm428 = vcmp.lt.s32.totalorder %v422, 16
        %vm429 = vcmp.lt.s32.totalorder %v423, 16
        %vm430 = vmand %vm426, %vm428
        %vm431 = vmand %vm427, %vm429
        %432 = vrot.lane.b32.xlu0 %v354, 126
        %v433 = vpop.permute.xlu0 %432
        %434 = vrot.lane.b32.xlu0 %v346, 126
        %v435 = vpop.permute.xlu0 %434
        %436 = vrot.lane.b32.xlu0 %v356, 126
        %v437 = vpop.permute.xlu0 %436
        %438 = vrot.lane.b32.xlu0 %v355, 126
        %v439 = vpop.permute.xlu0 %438
        %440 = vrot.lane.b32.xlu0 %v347, 126
        %v441 = vpop.permute.xlu0 %440
        %442 = vrot.lane.b32.xlu0 %v357, 126
        %v443 = vpop.permute.xlu0 %442
        %vm444 = vcmask 1031168
        %v445 = vsel %vm444, %v433, %v435
        %v446 = vsel %vm444, %v435, %v437
        %v447 = vsel %vm444, %v439, %v441
        %v448 = vsel %vm444, %v441, %v443
        %v453 = vsel %vm430, %v445, 0.0
        %v454 = vsel %vm431, %v446, 0.0
        %v455 = vsel %vm430, %v447, 0.0
        %v456 = vsel %vm431, %v448, 0.0
        %vm457 = vcmp.ge.s32.totalorder %v359, 0
        %vm458 = vcmp.ge.s32.totalorder %v360, 0
        %vm459 = vcmp.lt.s32.totalorder %v359, 256
        %vm460 = vcmp.lt.s32.totalorder %v360, 256
        %vm461 = vmand %vm457, %vm459
        %vm462 = vmand %vm458, %vm460
        %vm463 = vmand %vm461, %vm373
        %vm464 = vmand %vm462, %vm374
        %vm465 = vmand %vm463, %vm377
        %vm466 = vmand %vm464, %vm378
        %467 = vrot.lane.b32.xlu0 %v354, 112
        %v468 = vpop.permute.xlu0 %467
        %469 = vrot.lane.b32.xlu0 %v346, 112
        %v470 = vpop.permute.xlu0 %469
        %471 = vrot.lane.b32.xlu0 %v356, 112
        %v472 = vpop.permute.xlu0 %471
        %473 = vrot.lane.b32.xlu0 %v355, 112
        %v474 = vpop.permute.xlu0 %473
        %475 = vrot.lane.b32.xlu0 %v347, 112
        %v476 = vpop.permute.xlu0 %475
        %477 = vrot.lane.b32.xlu0 %v357, 112
        %v478 = vpop.permute.xlu0 %477
        %vm479 = vcmask 916480
        %v480 = vsel %vm479, %v468, %v470
        %v481 = vsel %vm479, %v470, %v472
        %v482 = vsel %vm479, %v474, %v476
        %v483 = vsel %vm479, %v476, %v478
        %v488 = vsel %vm465, %v480, 0.0
        %v489 = vsel %vm466, %v481, 0.0
        %v490 = vsel %vm465, %v482, 0.0
        %v491 = vsel %vm466, %v483, 0.0
        %vm492 = vmand %vm461, %vm385
        %vm493 = vmand %vm462, %vm386
        %vm494 = vmand %vm492, %vm389
        %vm495 = vmand %vm493, %vm390
        %496 = vrot.lane.b32.xlu0 %v354, 111
        %v497 = vpop.permute.xlu0 %496
        %498 = vrot.lane.b32.xlu0 %v346, 111
        %v499 = vpop.permute.xlu0 %498
        %500 = vrot.lane.b32.xlu0 %v356, 111
        %v501 = vpop.permute.xlu0 %500
        %502 = vrot.lane.b32.xlu0 %v355, 111
        %v503 = vpop.permute.xlu0 %502
        %504 = vrot.lane.b32.xlu0 %v347, 111
        %v505 = vpop.permute.xlu0 %504
        %506 = vrot.lane.b32.xlu0 %v357, 111
        %v507 = vpop.permute.xlu0 %506
        %vm508 = vcmask 908288
        %v509 = vsel %vm508, %v497, %v499
        %v510 = vsel %vm508, %v499, %v501
        %v511 = vsel %vm508, %v503, %v505
        %v512 = vsel %vm508, %v505, %v507
        %v517 = vsel %vm494, %v509, 0.0
        %v518 = vsel %vm495, %v510, 0.0
        %v519 = vsel %vm494, %v511, 0.0
        %v520 = vsel %vm495, %v512, 0.0
        %vm521 = vmand %vm461, %vm424
        %vm522 = vmand %vm462, %vm425
        %vm523 = vmand %vm521, %vm428
        %vm524 = vmand %vm522, %vm429
        %525 = vrot.lane.b32.xlu0 %v354, 110
        %v526 = vpop.permute.xlu0 %525
        %527 = vrot.lane.b32.xlu0 %v346, 110
        %v528 = vpop.permute.xlu0 %527
        %529 = vrot.lane.b32.xlu0 %v356, 110
        %v530 = vpop.permute.xlu0 %529
        %531 = vrot.lane.b32.xlu0 %v355, 110
        %v532 = vpop.permute.xlu0 %531
        %533 = vrot.lane.b32.xlu0 %v347, 110
        %v534 = vpop.permute.xlu0 %533
        %535 = vrot.lane.b32.xlu0 %v357, 110
        %v536 = vpop.permute.xlu0 %535
        %vm537 = vcmask 900096
        %v538 = vsel %vm537, %v526, %v528
        %v539 = vsel %vm537, %v528, %v530
        %v540 = vsel %vm537, %v532, %v534
        %v541 = vsel %vm537, %v534, %v536
        %v546 = vsel %vm523, %v538, 0.0
        %v547 = vsel %vm524, %v539, 0.0
        %v548 = vsel %vm523, %v540, 0.0
        %v549 = vsel %vm524, %v541, 0.0
        %v550 = vadd.s32 %v359, 16
        %v551 = vadd.s32 %v360, 16
        %vm552 = vcmp.ge.s32.totalorder %v550, 0
        %vm553 = vcmp.ge.s32.totalorder %v551, 0
        %vm554 = vcmp.lt.s32.totalorder %v550, 256
        %vm555 = vcmp.lt.s32.totalorder %v551, 256
        %vm556 = vmand %vm552, %vm554
        %vm557 = vmand %vm553, %vm555
        %vm558 = vmand %vm556, %vm373
        %vm559 = vmand %vm557, %vm374
        %vm560 = vmand %vm558, %vm377
        %vm561 = vmand %vm559, %vm378
        %562 = vrot.lane.b32.xlu0 %v354, 96
        %v563 = vpop.permute.xlu0 %562
        %564 = vrot.lane.b32.xlu0 %v346, 96
        %v565 = vpop.permute.xlu0 %564
        %566 = vrot.lane.b32.xlu0 %v356, 96
        %v567 = vpop.permute.xlu0 %566
        %568 = vrot.lane.b32.xlu0 %v355, 96
        %v569 = vpop.permute.xlu0 %568
        %570 = vrot.lane.b32.xlu0 %v347, 96
        %v571 = vpop.permute.xlu0 %570
        %572 = vrot.lane.b32.xlu0 %v357, 96
        %v573 = vpop.permute.xlu0 %572
        %vm574 = vcmask 785408
        %v575 = vsel %vm574, %v563, %v565
        %v576 = vsel %vm574, %v565, %v567
        %v577 = vsel %vm574, %v569, %v571
        %v578 = vsel %vm574, %v571, %v573
        %v583 = vsel %vm560, %v575, 0.0
        %v584 = vsel %vm561, %v576, 0.0
        %v585 = vsel %vm560, %v577, 0.0
        %v586 = vsel %vm561, %v578, 0.0
        %vm587 = vmand %vm556, %vm385
        %vm588 = vmand %vm557, %vm386
        %vm589 = vmand %vm587, %vm389
        %vm590 = vmand %vm588, %vm390
        %591 = vrot.lane.b32.xlu0 %v354, 95
        %v592 = vpop.permute.xlu0 %591
        %593 = vrot.lane.b32.xlu0 %v346, 95
        %v594 = vpop.permute.xlu0 %593
        %595 = vrot.lane.b32.xlu0 %v356, 95
        %v596 = vpop.permute.xlu0 %595
        %597 = vrot.lane.b32.xlu0 %v355, 95
        %v598 = vpop.permute.xlu0 %597
        %599 = vrot.lane.b32.xlu0 %v347, 95
        %v600 = vpop.permute.xlu0 %599
        %601 = vrot.lane.b32.xlu0 %v357, 95
        %v602 = vpop.permute.xlu0 %601
        %vm603 = vcmask 777216
        %v604 = vsel %vm603, %v592, %v594
        %v605 = vsel %vm603, %v594, %v596
        %v606 = vsel %vm603, %v598, %v600
        %v607 = vsel %vm603, %v600, %v602
        %v612 = vsel %vm589, %v604, 0.0
        %v613 = vsel %vm590, %v605, 0.0
        %v614 = vsel %vm589, %v606, 0.0
        %v615 = vsel %vm590, %v607, 0.0
        %vm616 = vmand %vm556, %vm424
        %vm617 = vmand %vm557, %vm425
        %vm618 = vmand %vm616, %vm428
        %vm619 = vmand %vm617, %vm429
        %620 = vrot.lane.b32.xlu0 %v354, 94
        %v621 = vpop.permute.xlu0 %620
        %622 = vrot.lane.b32.xlu0 %v346, 94
        %v623 = vpop.permute.xlu0 %622
        %624 = vrot.lane.b32.xlu0 %v356, 94
        %v625 = vpop.permute.xlu0 %624
        %626 = vrot.lane.b32.xlu0 %v355, 94
        %v627 = vpop.permute.xlu0 %626
        %628 = vrot.lane.b32.xlu0 %v347, 94
        %v629 = vpop.permute.xlu0 %628
        %630 = vrot.lane.b32.xlu0 %v357, 94
        %v631 = vpop.permute.xlu0 %630
        %vm632 = vcmask 769024
        %v633 = vsel %vm632, %v621, %v623
        %v634 = vsel %vm632, %v623, %v625
        %v635 = vsel %vm632, %v627, %v629
        %v636 = vsel %vm632, %v629, %v631
        %v641 = vsel %vm618, %v633, 0.0
        %v642 = vsel %vm619, %v634, 0.0
        %v643 = vsel %vm618, %v635, 0.0
        %v644 = vsel %vm619, %v636, 0.0
        %v645 = vld [vmem:[%s3] sm:$0xff]
        %v646 = vld [vmem:[%s4] sm:$0xf]
        %648 = vset.pattern.permute.xlu0 0
        %649 = vperm.xlu0 %648, %v646
        %v650 = vpop.permute.xlu0 %649
        %v653 = vcombine.high %v645, %v645
        %vm654 = vcmask 130048
        %v655 = vsel %vm654, %v653, 0
        %657 = vmatprep.subr.mxu0 %v382
        %658 = vmatpush1.msra.mxu0 %v381
        %659 = vmatprep.subr.mxu0 %v384
        %660 = vmatpush1.msra.mxu0 %v383
        %661 = vmatprep.subr.mxu0 %v419
        %662 = vmatpush1.msra.mxu0 %v418
        %663 = vmatprep.subr.mxu0 %v421
        %664 = vmatpush1.msra.mxu0 %v420
        %665 = vmatprep.subr.mxu0 %v454
        %666 = vmatpush1.msra.mxu0 %v453
        %667 = vmatprep.subr.mxu0 %v456
        %668 = vmatpush1.msra.mxu0 %v455
        %669 = vmatprep.subr.mxu0 %v489
        %670 = vmatpush1.msra.mxu0 %v488
        %671 = vmatprep.subr.mxu0 %v491
        %672 = vmatpush1.msra.mxu0 %v490
        %673 = vmatprep.subr.mxu0 %v518
        %674 = vmatpush1.msra.mxu0 %v517
        %675 = vmatprep.subr.mxu0 %v520
        %676 = vmatpush1.msra.mxu0 %v519
        %677 = vmatprep.subr.mxu0 %v547
        %678 = vmatpush1.msra.mxu0 %v546
        %679 = vmatprep.subr.mxu0 %v549
        %680 = vmatpush1.msra.mxu0 %v548
        %681 = vmatprep.subr.mxu0 %v584
        %682 = vmatpush1.msra.mxu0 %v583
        %683 = vmatprep.subr.mxu0 %v586
        %684 = vmatpush1.msra.mxu0 %v585
        %685 = vmatprep.subr.mxu0 %v613
        %686 = vmatpush1.msra.mxu0 %v612
        %687 = vmatprep.subr.mxu0 %v615
        %688 = vmatpush1.msra.mxu0 %v614
        %689 = vmatprep.subr.mxu0 %v642
        %690 = vmatpush1.msra.mxu0 %v641
        %691 = vmatprep.subr.mxu0 %v644
        %692 = vmatpush1.msra.mxu0 %v643
        %693 = vmatprep.subr.mxu0 0.0
        %694 = vmatpush1.msra.mxu0 0.0
        %695 = vmatprep.subr.mxu0 0.0
        %696 = vmatpush1.msra.mxu0 0.0
        %697 = vmatprep.subr.mxu0 0.0
        %698 = vmatpush1.msra.mxu0 0.0
        %699 = vmatprep.subr.mxu0 0.0
        %700 = vmatpush1.msra.mxu0 0.0
        %701 = vmatprep.subr.mxu0 0.0
        %702 = vmatpush1.msra.mxu0 0.0
        %703 = vmatprep.subr.mxu0 0.0
        %704 = vmatpush1.msra.mxu0 0.0
        %705 = vmatprep.subr.mxu0 0.0
        %706 = vmatpush1.msra.mxu0 0.0
        %707 = vmatprep.subr.mxu0 0.0
        %708 = vmatpush1.msra.mxu0 0.0
        %709 = vmatprep.subr.mxu0 0.0
        %710 = vmatpush1.msra.mxu0 0.0
        %711 = vmatprep.subr.mxu0 0.0
        %712 = vmatpush1.msra.mxu0 0.0
        %713 = vmatprep.subr.mxu0 0.0
        %714 = vmatpush1.msra.mxu0 0.0
        %715 = vmatprep.subr.mxu0 0.0
        %716 = vmatpush1.msra.mxu0 0.0
        %717 = vmatprep.subr.mxu0 0.0
        %718 = vmatpush1.msra.mxu0 0.0
        %719 = vmatprep.subr.mxu0 0.0
        %720 = vmatpush1.msra.mxu0 0.0
        %721 = vmatprep.mubr.f32.mxu0 %v655
        %722 = vmatmul.mubr.f32.gmra.mrb[0].mxu0 %v645
        %v723 = vpop.f32.mrb[0].mxu0
        %v724 = vadd.f32 %v650, %v723
        %v725 = vpop.f32.mrb[0].mxu0
        %v726 = vadd.f32 %v650, %v725
        %727 = vdwg.mxu0
        %v728 = vmax.f32 %v724, 0.0
        %v729 = vmax.f32 %v726, 0.0
        %731 = vst [vmem:[%s217] sm:$0xf] %v223
        %732 = vst [vmem:[%s217 + $0x8] sm:$0xf] %v239
        %v735 = vrot.slane %v728, 4
        %v736 = vrot.slane %v729, 4
        %739 = vst [vmem:[%s217] sm:$0xf0] %v735
        %740 = vst [vmem:[%s217 + $0x8] sm:$0xf0] %v736
        %s741 = sand.u32 %s137, 1
        %s742 = scalar_lea.sflag [#allocation3], %s741
        %s743 = sand.u32 %s137, 1
        %s744 = smul.addr %s743, 16
        %s745 = scalar_lea.vmem [#allocation2], %s744
        // Predicated region
        $region41: #{tpu_custom_call.1} parent=39 // pred_check
          %p746 = pneg %p147
        $region42: #{tpu_custom_call.1} parent=39 // pred_check_branch
          %748 = sbr.rel (%p746) target = $region44
        $region43: #{tpu_custom_call.1} parent=39 // pred_region
          %s750 = ssub.s32 256, 256
          %751 = vsyncadd %s742, %s750
          %s752 = smul.addr %s19, 2
          %s753 = smul.addr %s752, 128
          %s754 = scalar_lea.hbm %s5, %s753
          %s756 = sshll.u32 %s745, 4
          %s757 = int_to_ptr.vmem [resolvable:$true] %s756
          %759 = dma.vmem_to_hbm [thread:$0]  %s757, 256, %s754, %s742
        $region44: #{tpu_custom_call.1} parent=39 // pred_fallthru
          _
      $region40: #{tpu_custom_call.1} parent=5 // pred_fallthru
        _
      %p760 = scmp.le.s32.totalorder 2, %s14
      // Predicated region
      $region45: #{tpu_custom_call.1} parent=5 // pred_check
        %p761 = pneg %p760
      $region46: #{tpu_custom_call.1} parent=5 // pred_check_branch
        %763 = sbr.rel (%p761) target = $region48
      $region47: #{tpu_custom_call.1} parent=5 // pred_region
        %s764 = ssub.s32 %s14, 2
        // Predicated region
        $region49: #{tpu_custom_call.1} parent=47 // pred_check
          %p765 = pneg %p153
        $region50: #{tpu_custom_call.1} parent=47 // pred_check_branch
          %767 = sbr.rel (%p765) target = $region52
        $region51: #{tpu_custom_call.1} parent=47 // pred_region
          %s768 = sand.u32 %s138, 1
          %s769 = scalar_lea.sflag [#allocation3], %s768
          %s770 = sand.u32 %s138, 1
          %s771 = smul.addr %s770, 16
          %s772 = scalar_lea.vmem [#allocation2], %s771
          %773 = dma.done %s769, 256
        $region52: #{tpu_custom_call.1} parent=47 // pred_fallthru
          _
      $region48: #{tpu_custom_call.1} parent=5 // pred_fallthru
        _
    $region6: #{tpu_custom_call.1} parent=1 // loop_footer
      %s18 = sadd.s32 1, %s14
    $region7: #{tpu_custom_call.1} parent=1 // loop_footer_branch
      %13 = sbr.rel target = $region3
    $region8: #{tpu_custom_call.1} parent=1 // loop_exit
      _
    %774 = vsyncpa [#allocation3], 1
    %s775 = scalar_lea.sflag [#allocation3], 1
    %776 = vsyncpa %s775, 1

</llo_original>
